<compile_context>
chip_gen: v5e
topology: v5e:2x2
jax: 0.10.0
libtpu: 0.0.40
codegen_flags: <defaults>
</compile_context>

<pallas_src>
import numpy as np
import jax
import jax.numpy as jnp
from jax.experimental import pallas as pl
from jax.experimental.pallas import tpu as pltpu


def _sigmoid_kernel(x_ref, o_ref):
    # Upcast once per tile so low-precision inputs go through exp/recip in f32
    # (v5e EUP/VPU have no native bf16 path).
    x = x_ref[...].astype(jnp.float32)
    e = jnp.exp(-x)                              # EUP
    y = pl.reciprocal(1.0 + e, approx=False)     # EUP, exact (keeps 1e-6 tol)
    o_ref[...] = y.astype(o_ref.dtype)


def _pick_block(dim, align, target):
    """Largest divisor of `dim` that is a multiple of `align` and <= `target`.

    Falls back to the full dim when `dim` is not a multiple of `align`
    (Pallas allows block dim == full array dim)."""
    if dim % align != 0:
        return dim
    cap = min(dim, target)
    d = cap - (cap % align)
    while d >= align:
        if dim % d == 0:
            return d
        d -= align
    return align  # unreachable: align always divides dim here


def to_image(x, image_channels=1):
    """x: [batch, in_units] -> sigmoid(x) reshaped to [batch, C, H, W]."""
    batch_size, in_units = x.shape
    image_size = int(np.sqrt(in_units // image_channels))
    assert image_channels * image_size * image_size == in_units, \
        "in_units must equal C * S * S"

    # Tile sizes: lane dim multiple of 128 (<=2048), sublane multiple of 8
    # (<=256).  f32 worst case: 256*2048*4B = 2 MiB/buffer, x4 double-buffered
    # in/out = 8 MiB -> fits default scoped VMEM on v5e/v6e/v7x.
    bf = _pick_block(in_units, 128, 2048)
    bb = _pick_block(batch_size, 8, 256)
    grid = (batch_size // bb, in_units // bf)

    out_flat = pl.pallas_call(
        _sigmoid_kernel,
        out_shape=jax.ShapeDtypeStruct((batch_size, in_units), x.dtype),
        grid=grid,
        in_specs=[pl.BlockSpec((bb, bf), lambda i, j: (i, j))],
        out_specs=pl.BlockSpec((bb, bf), lambda i, j: (i, j)),
        compiler_params=pltpu.CompilerParams(
            dimension_semantics=("parallel", "parallel")),
    )(x)

    # Pure view / reshape glue (matches torch .view on contiguous NCHW-flat data).
    return out_flat.reshape(batch_size, image_channels, image_size, image_size)


if __name__ == "__main__":
    key = jax.random.PRNGKey(0)
    batch_size = 2
    image_channels = 4
    image_size = 16
    in_units = image_channels * image_size * image_size  # 1024

    x = jax.random.normal(key, (batch_size, in_units), dtype=jnp.float32)

    out = to_image(x, image_channels=image_channels)
    out = jax.block_until_ready(out)

    # Sanity check against plain-JAX reference.
    ref = jax.nn.sigmoid(x).reshape(batch_size, image_channels, image_size, image_size)
    assert out.shape == (batch_size, image_channels, image_size, image_size)
    assert jnp.allclose(out, ref, atol=1e-6), "mismatch vs reference"

    print("KERNEL_OK")
</pallas_src>

<mosaic_0001>
module attributes {stable_mosaic.version = 11 : i64} {
  func.func @_sigmoid_kernel(%arg0: i32, %arg1: i32, %arg2: memref<2x1024xf32, #tpu.memory_space<vmem>>, %arg3: memref<2x1024xf32, #tpu.memory_space<vmem>>) attributes {dimension_semantics = [#tpu.dimension_semantics<parallel>, #tpu.dimension_semantics<parallel>], iteration_bounds = array<i64: 1, 1>, scalar_prefetch = 0 : i64, scratch_operands = 0 : i64, tpu.core_type = #tpu.core_type<tc>, window_params = [{transform_indices = @transform_0, window_bounds = array<i64: 2, 1024>}, {transform_indices = @transform_1, window_bounds = array<i64: 2, 1024>}]} {
    %c0 = arith.constant 0 : index
    %c0_0 = arith.constant 0 : index
    %0 = vector.load %arg2[%c0, %c0_0] : memref<2x1024xf32, #tpu.memory_space<vmem>>, vector<2x1024xf32>
    %cst = arith.constant 0.000000e+00 : f32
    %1 = vector.broadcast %cst : f32 to vector<2x1024xf32>
    %2 = arith.subf %1, %0 : vector<2x1024xf32>
    %3 = math.exp %2 : vector<2x1024xf32>
    %cst_1 = arith.constant 1.000000e+00 : f32
    %4 = vector.broadcast %cst_1 : f32 to vector<2x1024xf32>
    %5 = arith.addf %4, %3 : vector<2x1024xf32>
    %6 = tpu.reciprocal %5 : vector<2x1024xf32> -> vector<2x1024xf32>
    %c0_2 = arith.constant 0 : index
    %c0_3 = arith.constant 0 : index
    %7 = vector.load %arg3[%c0_2, %c0_3] : memref<2x1024xf32, #tpu.memory_space<vmem>>, vector<2x1024xf32>
    tpu.vector_store %arg3[%c0_2, %c0_3], %6 {strides = array<i32>} : memref<2x1024xf32, #tpu.memory_space<vmem>>, vector<2x1024xf32>,
    return
  }
  func.func @transform_0(%arg0: i32, %arg1: i32) -> (i32, i32) {
    %c0_i32 = arith.constant 0 : i32
    return %arg0, %arg1 : i32, i32
  }
  func.func @transform_1(%arg0: i32, %arg1: i32) -> (i32, i32) {
    %c0_i32 = arith.constant 0 : i32
    return %arg0, %arg1 : i32, i32
  }
}

</mosaic_0001>

<llo_original>
// kernel: tpu_custom_call.1
$region0: #{tpu_custom_call.1}
  #allocation0 [shape = 'u32[]', space=smem, size = 0x4, offset = 0x4, fixed_abs, tag = 'smem constant byte address 0x4 - core index']
  #allocation1 [shape = 'u32[72,128]{1,0:T(1,128)}', space=vmem, size = 0x9000, scoped, tag = 'internal scratch']
  %s0 = inlined_call_operand.hbm [shape: f32[2,1024], index: 0, kind: input, shape index: {}]
  %s1 = inlined_call_operand.hbm [shape: f32[2,1024], index: 1, kind: output, shape index: {}]
  %s2 = sld [smem:[#allocation0]]
  $region18: #{tpu_custom_call.1} parent=0
    _
  %s4 = ssub.s32 1, %s2
  %s5 = scalar_select 0, %s4, %s2
  $region1: #{tpu_custom_call.1} parent=0
    #allocation2 [shape = 'u8[8192]{0}', space=vmem, size = 0x2000, scoped, tag = 'input window, operand 0, single buffered']
    #allocation3 [shape = 's32[1]{0}', space=sflag, size = 0x4, scoped, tag = 'scoped memory for tpu_custom_call.1']
    #allocation4 [shape = 's32[1]{0}', space=sflag, size = 0x4, scoped, tag = 'scoped memory for tpu_custom_call.1']
    #allocation5 [shape = 'u8[8192]{0}', space=vmem, size = 0x2000, scoped, tag = 'output window, operand 0, single buffered']
    %6 = vsyncpa [#allocation3], 0
    %7 = vsyncpa [#allocation4], 0
    // Predicated region
    $region2: #{tpu_custom_call.1} parent=1 // pred_check
      _
    $region3: #{tpu_custom_call.1} parent=1 // pred_check_branch
      %9 = sbr.rel (0) target = $region5
    $region4: #{tpu_custom_call.1} parent=1 // pred_region
      %11 = vsyncadd [#allocation3], 0
      %s13 = sshll.u32 %s0, 4
      %s14 = int_to_ptr.hbm [resolvable:$true] %s13
      %s15 = sshll.u32 [#allocation2], 4
      %s16 = int_to_ptr.vmem [resolvable:$true] %s15
      %18 = dma.hbm_to_vmem [thread:$0]  %s14, 256, %s16, [#allocation3]
    $region5: #{tpu_custom_call.1} parent=1 // pred_fallthru
      _
    // Predicated region
    $region6: #{tpu_custom_call.1} parent=1 // pred_check
      _
    $region7: #{tpu_custom_call.1} parent=1 // pred_check_branch
      %20 = sbr.rel (0) target = $region9
    $region8: #{tpu_custom_call.1} parent=1 // pred_region
      %22 = dma.done [#allocation3], 256
    $region9: #{tpu_custom_call.1} parent=1 // pred_fallthru
      _
    %v23 = vld [vmem:[#allocation2] sm:$0xff]
    %v24 = vld [vmem:[#allocation2 + $0x8] sm:$0xff]
    %v25 = vsub.f32 0.0, %v23
    %v26 = vsub.f32 0.0, %v24
    %v27 = vmul.f32 %v25, 1.442695
    %v28 = vpow.pop %v27
    %v29 = vmul.f32 %v26, 1.442695
    %v30 = vpow.pop %v29
    %v31 = vadd.f32 %v28, 1.0
    %v32 = vadd.f32 %v30, 1.0
    %v33 = vrcp.pop %v31
    %v34 = vmul.f32 %v31, %v33
    %v35 = vsub.f32 1.0, %v34
    %v36 = vmul.f32 %v33, %v35
    %v37 = vadd.f32 %v33, %v36
    %vm38 = vweird.f32 %v31
    %vm39 = vweird.f32 %v33
    %vm40 = vmor %vm38, %vm39
    %v41 = vsel %vm40, %v33, %v37
    %v42 = vand.u32 2147483647, %v31
    %vm43 = vcmp.eq.f32.partialorder %v42, 8.507059e+37
    %v44 = vand.u32 %v31, 2147483648
    %v45 = vor.u32 1.1754944e-38, %v44
    %v46 = vsel %vm43, %v45, %v41
    %v47 = vrcp.pop %v32
    %v48 = vmul.f32 %v32, %v47
    %v49 = vsub.f32 1.0, %v48
    %v50 = vmul.f32 %v47, %v49
    %v51 = vadd.f32 %v47, %v50
    %vm52 = vweird.f32 %v32
    %vm53 = vweird.f32 %v47
    %vm54 = vmor %vm52, %vm53
    %v55 = vsel %vm54, %v47, %v51
    %v56 = vand.u32 2147483647, %v32
    %vm57 = vcmp.eq.f32.partialorder %v56, 8.507059e+37
    %v58 = vand.u32 %v32, 2147483648
    %v59 = vor.u32 1.1754944e-38, %v58
    %v60 = vsel %vm57, %v59, %v55
    %61 = vst [vmem:[#allocation5] sm:$0xff] %v46
    %62 = vst [vmem:[#allocation5 + $0x8] sm:$0xff] %v60
    // Predicated region
    $region10: #{tpu_custom_call.1} parent=1 // pred_check
      _
    $region11: #{tpu_custom_call.1} parent=1 // pred_check_branch
      %64 = sbr.rel (0) target = $region13
    $region12: #{tpu_custom_call.1} parent=1 // pred_region
      %66 = vsyncadd [#allocation4], 0
      %s68 = sshll.u32 [#allocation5], 4
      %s69 = int_to_ptr.vmem [resolvable:$true] %s68
      %s70 = sshll.u32 %s1, 4
      %s71 = int_to_ptr.hbm [resolvable:$true] %s70
      %73 = dma.vmem_to_hbm [thread:$0]  %s69, 256, %s71, [#allocation4]
    $region13: #{tpu_custom_call.1} parent=1 // pred_fallthru
      _
    // Predicated region
    $region14: #{tpu_custom_call.1} parent=1 // pred_check
      _
    $region15: #{tpu_custom_call.1} parent=1 // pred_check_branch
      %75 = sbr.rel (0) target = $region17
    $region16: #{tpu_custom_call.1} parent=1 // pred_region
      %77 = dma.done [#allocation4], 256
    $region17: #{tpu_custom_call.1} parent=1 // pred_fallthru
      _
    %78 = vsyncpa [#allocation3], 1
    %79 = vsyncpa [#allocation4], 1

</llo_original>
